<compile_context>
chip_gen: v5e
topology: v5e:2x2
jax: 0.10.0
libtpu: 0.0.40
codegen_flags: <defaults>
</compile_context>

<pallas_src>
import math

import jax
import jax.numpy as jnp
from jax import lax
from jax.experimental import pallas as pl
from jax.experimental.pallas import tpu as pltpu


def _round_up(n, m):
    return ((n + m - 1) // m) * m


# ---------------------------------------------------------------------------
# Kernels
# ---------------------------------------------------------------------------
def _single_k_kernel(x_ref, w_ref, o_ref):
    """Whole-D path: one MXU matmul per batch tile, no accumulator RMW."""
    latents = jnp.dot(x_ref[...], w_ref[...], preferred_element_type=jnp.float32)
    sq = jnp.sum(latents * latents, axis=-1, keepdims=True)
    # F.normalize eps=1e-12 clamps the norm; clamping the squared norm at
    # 1e-24 is equivalent.  rsqrt lands on the EUP; divide becomes one vmul.
    inv = lax.rsqrt(jnp.maximum(sq, 1e-24))
    o_ref[...] = (latents * inv).astype(o_ref.dtype)


def _multi_k_kernel(x_ref, w_ref, o_ref, acc_ref):
    """K-tiled path (K last, 'arbitrary') with an f32 VMEM accumulator."""
    k = pl.program_id(1)

    @pl.when(k == 0)
    def _init():
        acc_ref[...] = jnp.zeros_like(acc_ref)

    acc_ref[...] += jnp.dot(x_ref[...], w_ref[...],
                            preferred_element_type=jnp.float32)

    @pl.when(k == pl.num_programs(1) - 1)
    def _finalize():
        latents = acc_ref[...]
        sq = jnp.sum(latents * latents, axis=-1, keepdims=True)
        inv = lax.rsqrt(jnp.maximum(sq, 1e-24))
        o_ref[...] = (latents * inv).astype(o_ref.dtype)


# ---------------------------------------------------------------------------
# Wrapper
# ---------------------------------------------------------------------------
def _vmem_budget_bytes():
    """Physical VMEM minus ~25% headroom; conservative v7x-sized fallback."""
    try:
        cap = int(pltpu.get_tpu_info().vmem_capacity_bytes)
    except Exception:
        cap = 64 * 1024 * 1024
    return (cap * 3) // 4


def embed_to_latents(x, weight, *, block_b=512, block_k=2048,
                     compute_dtype=jnp.bfloat16):
    """EmbedToLatents forward: F.normalize(x @ weight.T, dim=-1).

    x: (B, D); weight: (L, D) in PyTorch nn.Linear layout.  Returns (B, L) in
    x.dtype.  compute_dtype sets the MXU operand dtype (bf16 default,
    accumulation always f32); pass jnp.float32 for 1e-5-accurate results.
    """
    B, D = x.shape
    L, D2 = weight.shape
    assert D == D2, (D, D2)

    out_dtype = x.dtype
    in_dtype = (jnp.dtype(compute_dtype) if compute_dtype is not None
                else jnp.dtype(x.dtype))
    in_item = in_dtype.itemsize
    out_item = jnp.dtype(out_dtype).itemsize

    # sublane granularity for the batch tile (sub-32-bit dtypes pack rows)
    gran_b = max(8, 32 // min(in_item, out_item))

    # lane-dense output: pad the latent dim to a 128 multiple (zero weight
    # rows add zero columns and do not perturb the row L2 norm).
    L_p = _round_up(L, 128)

    budget = _vmem_budget_bytes()

    # ---- batch tile --------------------------------------------------------
    tb = max(gran_b, min(_round_up(int(block_b), gran_b), _round_up(B, gran_b)))

    # ---- try the weight-resident / whole-D (single K tile) path ------------
    def _fits_single(tb_):
        return (2 * D * L_p * in_item          # double-buffered weight
                + 2 * tb_ * D * in_item        # double-buffered x tile
                + 2 * tb_ * L_p * out_item     # double-buffered output tile
                ) <= budget

    single_k = False
    tb_try = tb
    while True:
        if _fits_single(tb_try):
            single_k, tb = True, tb_try
            break
        if tb_try <= gran_b:
            break
        tb_try = max(gran_b, _round_up(tb_try // 2, gran_b))

    if single_k:
        block_k_eff, D_p = D, D
        # keep both TensorCores busy (v7x): ensure >= 2 grid points on the
        # parallel batch axis when one tile would otherwise cover all of B.
        if -(-B // tb) == 1 and tb >= 2 * gran_b and B > gran_b:
            tb = max(gran_b, _round_up((B + 1) // 2, gran_b))
    else:
        # ---- multi-K fallback: 128-multiple K tile, preferring a divisor of
        # D so x needs no per-call padding round trip.
        bk_cap = max(128, _round_up(min(int(block_k), D), 128))

        def _fits_multi(tb_, tk_):
            return (2 * tk_ * L_p * in_item
                    + 2 * tb_ * tk_ * in_item
                    + 2 * tb_ * L_p * out_item
                    + tb_ * L_p * 4) <= budget  # f32 accumulator

        while not _fits_multi(tb, bk_cap):
            if bk_cap > 128:
                bk_cap = max(128, _round_up(bk_cap // 2, 128))
            elif tb > gran_b:
                tb = max(gran_b, _round_up(tb // 2, gran_b))
            else:
                break

        block_k_eff = None
        if D % 128 == 0:
            for mult in range(bk_cap // 128, 0, -1):
                if D % (mult * 128) == 0:
                    block_k_eff = mult * 128
                    break
        if block_k_eff is not None:
            D_p = D
        else:
            block_k_eff = bk_cap
            D_p = _round_up(D, block_k_eff)

    grid_b = -(-B // tb)

    # ---- wrapper-side layout plumbing (parameter-only; folded under jit) ---
    # Pre-transpose to a standard [K, N] RHS so the MXU contraction never
    # needs an in-kernel transpose of the weight tile.
    w_t = jnp.transpose(weight)                      # (D, L)
    if (L_p != L) or (D_p != D):
        w_t = jnp.pad(w_t, ((0, D_p - D), (0, L_p - L)))
    x_p = x if D_p == D else jnp.pad(x, ((0, 0), (0, D_p - D)))
    if w_t.dtype != in_dtype:
        w_t = w_t.astype(in_dtype)
    if x_p.dtype != in_dtype:
        x_p = x_p.astype(in_dtype)

    vmem_limit = int(max(32 * 1024 * 1024, budget))

    if single_k:
        out = pl.pallas_call(
            _single_k_kernel,
            out_shape=jax.ShapeDtypeStruct((B, L_p), out_dtype),
            grid_spec=pltpu.PrefetchScalarGridSpec(
                num_scalar_prefetch=0,
                grid=(grid_b,),
                in_specs=[
                    pl.BlockSpec((tb, D_p), lambda i: (i, 0)),
                    # constant block index: weight is DMA'd once and stays
                    # resident in VMEM for the whole grid.
                    pl.BlockSpec((D_p, L_p), lambda i: (0, 0)),
                ],
                out_specs=pl.BlockSpec((tb, L_p), lambda i: (i, 0)),
            ),
            compiler_params=pltpu.CompilerParams(
                dimension_semantics=("parallel",),
                vmem_limit_bytes=vmem_limit,
            ),
        )(x_p, w_t)
    else:
        grid_k = D_p // block_k_eff
        out = pl.pallas_call(
            _multi_k_kernel,
            out_shape=jax.ShapeDtypeStruct((B, L_p), out_dtype),
            grid_spec=pltpu.PrefetchScalarGridSpec(
                num_scalar_prefetch=0,
                grid=(grid_b, grid_k),
                in_specs=[
                    pl.BlockSpec((tb, block_k_eff), lambda i, k: (i, k)),
                    pl.BlockSpec((block_k_eff, L_p), lambda i, k: (k, 0)),
                ],
                out_specs=pl.BlockSpec((tb, L_p), lambda i, k: (i, 0)),
                scratch_shapes=[pltpu.VMEM((tb, L_p), jnp.float32)],
            ),
            compiler_params=pltpu.CompilerParams(
                dimension_semantics=("parallel", "arbitrary"),
                vmem_limit_bytes=vmem_limit,
            ),
        )(x_p, w_t)

    if L_p != L:
        out = out[:, :L]
    return out


def reference(x, weight):
    latents = x @ weight.T
    norm = jnp.maximum(
        jnp.sqrt(jnp.sum(latents * latents, axis=-1, keepdims=True)), 1e-12
    )
    return latents / norm


if __name__ == "__main__":
    key = jax.random.PRNGKey(0)
    k_x, k_w = jax.random.split(key)

    B, D, L = 16, 32, 128  # batch, dim, dim_latents
    x = jax.random.normal(k_x, (B, D), dtype=jnp.float32)
    # deterministic init mimicking nn.Linear default (uniform in +/- 1/sqrt(D))
    bound = 1.0 / math.sqrt(D)
    weight = jax.random.uniform(
        k_w, (L, D), dtype=jnp.float32, minval=-bound, maxval=bound
    )

    ref = reference(x, weight)

    # f32 MXU operands: bit-accurate path for the strict tolerance check.
    out_f32 = jax.block_until_ready(
        embed_to_latents(x, weight, compute_dtype=jnp.float32)
    )
    assert out_f32.shape == (B, L)
    max_err = float(jnp.max(jnp.abs(out_f32 - ref)))
    assert jnp.allclose(out_f32, ref, atol=1e-5, rtol=1e-5), max_err

    # default bf16 MXU operands (f32 accumulation): production fast path.
    out_bf16 = jax.block_until_ready(embed_to_latents(x, weight))
    assert out_bf16.shape == (B, L)
    max_err_bf16 = float(jnp.max(jnp.abs(out_bf16 - ref)))
    assert jnp.allclose(out_bf16, ref, atol=3e-2, rtol=3e-2), max_err_bf16

    print("KERNEL_OK")
</pallas_src>

<mosaic_0001>
module attributes {stable_mosaic.version = 11 : i64} {
  func.func @_single_k_kernel(%arg0: i32, %arg1: memref<8x32xf32, #tpu.memory_space<vmem>>, %arg2: memref<32x128xf32, #tpu.memory_space<vmem>>, %arg3: memref<8x128xf32, #tpu.memory_space<vmem>>) attributes {dimension_semantics = [#tpu.dimension_semantics<parallel>], iteration_bounds = array<i64: 2>, scalar_prefetch = 0 : i64, scratch_operands = 0 : i64, tpu.core_type = #tpu.core_type<tc>, window_params = [{transform_indices = @transform_0, window_bounds = array<i64: 8, 32>}, {pipeline_mode = #tpu.pipeline_mode<synchronous>, transform_indices = @transform_1, window_bounds = array<i64: 32, 128>}, {transform_indices = @transform_2, window_bounds = array<i64: 8, 128>}]} {
    %c0 = arith.constant 0 : index
    %c0_0 = arith.constant 0 : index
    %0 = vector.load %arg1[%c0, %c0_0] : memref<8x32xf32, #tpu.memory_space<vmem>>, vector<8x32xf32>
    %c0_1 = arith.constant 0 : index
    %c0_2 = arith.constant 0 : index
    %1 = vector.load %arg2[%c0_1, %c0_2] : memref<32x128xf32, #tpu.memory_space<vmem>>, vector<32x128xf32>
    %cst = arith.constant dense<0.000000e+00> : vector<8x128xf32>
    %2 = tpu.matmul %0, %1, %cst {dimension_numbers = #tpu.dot_dimension_numbers<[1], [0], [0], [1], [0, 0, 1, 1], [], []>} : vector<8x32xf32>, vector<32x128xf32>, vector<8x128xf32> -> vector<8x128xf32>
    %3 = arith.mulf %2, %2 : vector<8x128xf32>
    %cst_3 = arith.constant dense<0.000000e+00> : vector<8xf32>
    %4 = vector.multi_reduction <add>, %3, %cst_3 [1] : vector<8x128xf32> to vector<8xf32>
    %5 = vector.shape_cast %4 : vector<8xf32> to vector<8x1xf32>
    %cst_4 = arith.constant 1.000000e-24 : f32
    %6 = vector.broadcast %cst_4 : f32 to vector<8x1xf32>
    %7 = arith.maximumf %5, %6 : vector<8x1xf32>
    %8 = math.rsqrt %7 : vector<8x1xf32>
    %9 = vector.broadcast %8 : vector<8x1xf32> to vector<8x128xf32>
    %10 = arith.mulf %2, %9 : vector<8x128xf32>
    %c0_5 = arith.constant 0 : index
    %c0_6 = arith.constant 0 : index
    %11 = vector.load %arg3[%c0_5, %c0_6] : memref<8x128xf32, #tpu.memory_space<vmem>>, vector<8x128xf32>
    tpu.vector_store %arg3[%c0_5, %c0_6], %10 {strides = array<i32>} : memref<8x128xf32, #tpu.memory_space<vmem>>, vector<8x128xf32>,
    return
  }
  func.func @transform_0(%arg0: i32) -> (i32, i32) {
    %c0_i32 = arith.constant 0 : i32
    %c0_i32_0 = arith.constant 0 : i32
    return %arg0, %c0_i32 : i32, i32
  }
  func.func @transform_1(%arg0: i32) -> (i32, i32) {
    %c0_i32 = arith.constant 0 : i32
    %c0_i32_0 = arith.constant 0 : i32
    %c0_i32_1 = arith.constant 0 : i32
    return %c0_i32, %c0_i32_0 : i32, i32
  }
  func.func @transform_2(%arg0: i32) -> (i32, i32) {
    %c0_i32 = arith.constant 0 : i32
    %c0_i32_0 = arith.constant 0 : i32
    return %arg0, %c0_i32 : i32, i32
  }
}

</mosaic_0001>

<llo_original>
// kernel: tpu_custom_call.1
$region0: #{tpu_custom_call.1}
  #allocation0 [shape = 'u32[]', space=smem, size = 0x4, offset = 0x4, fixed_abs, tag = 'smem constant byte address 0x4 - core index']
  #allocation1 [shape = 'u32[72,128]{1,0:T(1,128)}', space=vmem, size = 0x9000, scoped, tag = 'internal scratch']
  %s0 = inlined_call_operand.hbm [shape: f32[16,32], index: 0, kind: input, shape index: {}]
  %s1 = inlined_call_operand.hbm [shape: f32[32,128], index: 1, kind: input, shape index: {}]
  %s2 = inlined_call_operand.hbm [shape: f32[16,128], index: 2, kind: output, shape index: {}]
  %s3 = sld [smem:[#allocation0]]
  $region49: #{tpu_custom_call.1} parent=0
    _
  %s5 = ssub.s32 1, %s3
  %s6 = scalar_select 0, %s5, %s3
  $region1: #{tpu_custom_call.1} parent=0
    #allocation2 [shape = 'u8[8192]{0}', space=vmem, size = 0x2000, scoped, tag = 'input window, operand 0']
    #allocation3 [shape = 's32[2]{0}', space=sflag, size = 0x8, scoped, tag = 'scoped memory for tpu_custom_call.1']
    #allocation4 [shape = 's32[2]{0}', space=sflag, size = 0x8, scoped, tag = 'scoped memory for tpu_custom_call.1']
    #allocation5 [shape = 'u8[16384]{0}', space=vmem, size = 0x4000, scoped, tag = 'input window, operand 1, single buffered']
    #allocation6 [shape = 's32[1]{0}', space=sflag, size = 0x4, scoped, tag = 'scoped memory for tpu_custom_call.1']
    #allocation7 [shape = 'u8[8192]{0}', space=vmem, size = 0x2000, scoped, tag = 'output window, operand 0']
    %7 = vsyncpa [#allocation3], 0
    %s8 = scalar_lea.sflag [#allocation3], 1
    %9 = vsyncpa %s8, 0
    %10 = vsyncpa [#allocation6], 0
    %11 = vsyncpa [#allocation4], 0
    %s12 = scalar_lea.sflag [#allocation4], 1
    %13 = vsyncpa %s12, 0
    loop: start=0, step=1, limit=4
    $region2: #{tpu_custom_call.1} parent=1 // loop_pre_header
      _
    $region3: #{tpu_custom_call.1} parent=1 // loop_header
      %s15 = sphi 0, %s19
      %p16 = scmp.ge.s32.totalorder %s15, 4
      %s25 = sphi 0, %s27
      %s28 = sphi 0, %s25
      %s29 = sphi 0, %s28
      %s45 = sphi 0, %s29
      %s49 = sphi 0, %s49
      %s51 = sphi 0, %s49
      %s52 = sphi 0, %s51
      %s66 = sphi 0, %s52
      %s72 = sphi 0, %s74
      %s75 = sphi 0, %s72
      %s76 = sphi 0, %s75
      %s92 = sphi 0, %s76
    $region4: #{tpu_custom_call.1} parent=1 // loop_header_branch
      %18 = sbr.rel (%p16) target = $region8
    $region5: #{tpu_custom_call.1} parent=1 // loop_body
      %s20 = ssub.s32 %s15, 1
      %s21 = ssub.s32 %s15, 2
      %s22 = sadd.s32 %s15, 1
      %s23 = ssub.s32 %s15, %s22
      %p24 = scmp.eq.s32.totalorder %s23, 0
      %s26 = sadd.s32 %s25, 1
      %s27 = scalar_select %p24, %s25, %s26
      %p30 = pneg %p24
      %p31 = scmp.eq.s32.totalorder %s15, 1
      %p32 = por %p30, %p31
      %p33 = scmp.ne.s32.totalorder %s25, %s28
      %p34 = scmp.eq.s32.totalorder %s15, 0
      %p35 = por %p33, %p34
      %p36 = scmp.ne.s32.totalorder %s25, %s28
      %p37 = scmp.eq.s32.totalorder %s20, 1
      %p38 = por %p36, %p37
      %p39 = scmp.ne.s32.totalorder %s28, %s29
      %p40 = scmp.eq.s32.totalorder %s20, 0
      %p41 = por %p39, %p40
      %p42 = scmp.ne.s32.totalorder %s28, %s29
      %p43 = scmp.eq.s32.totalorder %s21, 1
      %p44 = por %p42, %p43
      %p46 = scmp.ne.s32.totalorder %s29, %s45
      %p47 = scmp.eq.s32.totalorder %s21, 0
      %p48 = por %p46, %p47
      %s50 = sadd.s32 %s49, 1
      %p53 = scmp.eq.s32.totalorder %s15, 1
      %p54 = scmp.ne.s32.totalorder %s49, %s51
      %p55 = scmp.eq.s32.totalorder %s15, 0
      %p56 = por %p54, %p55
      %p57 = scmp.ne.s32.totalorder %s49, %s51
      %p58 = scmp.eq.s32.totalorder %s20, 1
      %p59 = por %p57, %p58
      %p60 = scmp.ne.s32.totalorder %s51, %s52
      %p61 = scmp.eq.s32.totalorder %s20, 0
      %p62 = por %p60, %p61
      %p63 = scmp.ne.s32.totalorder %s51, %s52
      %p64 = scmp.eq.s32.totalorder %s21, 1
      %p65 = por %p63, %p64
      %p67 = scmp.ne.s32.totalorder %s52, %s66
      %p68 = scmp.eq.s32.totalorder %s21, 0
      %p69 = por %p67, %p68
      %s70 = ssub.s32 %s15, %s22
      %p71 = scmp.eq.s32.totalorder %s70, 0
      %s73 = sadd.s32 %s72, 1
      %s74 = scalar_select %p71, %s72, %s73
      %p77 = pneg %p71
      %p78 = scmp.eq.s32.totalorder %s15, 1
      %p79 = por %p77, %p78
      %p80 = scmp.ne.s32.totalorder %s72, %s75
      %p81 = scmp.eq.s32.totalorder %s15, 0
      %p82 = por %p80, %p81
      %p83 = scmp.ne.s32.totalorder %s72, %s75
      %p84 = scmp.eq.s32.totalorder %s20, 1
      %p85 = por %p83, %p84
      %p86 = scmp.ne.s32.totalorder %s75, %s76
      %p87 = scmp.eq.s32.totalorder %s20, 0
      %p88 = por %p86, %p87
      %p89 = scmp.ne.s32.totalorder %s75, %s76
      %p90 = scmp.eq.s32.totalorder %s21, 1
      %p91 = por %p89, %p90
      %p93 = scmp.ne.s32.totalorder %s76, %s92
      %p94 = scmp.eq.s32.totalorder %s21, 0
      %p95 = por %p93, %p94
      %p96 = scmp.le.s32.totalorder 1, %s15
      %p97 = scmp.lt.s32.totalorder %s15, 3
      %p98 = pnand %p96, %p97
      %p99 = pneg %p98
      // Predicated region
      $region9: #{tpu_custom_call.1} parent=5 // pred_check
        _
      $region10: #{tpu_custom_call.1} parent=5 // pred_check_branch
        %101 = sbr.rel (%p98) target = $region12
      $region11: #{tpu_custom_call.1} parent=5 // pred_region
        %s102 = ssub.s32 %s15, 1
        // Predicated region
        $region13: #{tpu_custom_call.1} parent=11 // pred_check
          %p103 = pneg %p62
        $region14: #{tpu_custom_call.1} parent=11 // pred_check_branch
          %105 = sbr.rel (%p103) target = $region16
        $region15: #{tpu_custom_call.1} parent=11 // pred_region
          %107 = vsyncadd [#allocation6], 0
          %s108 = sshll.u32 %s1, 4
          %s109 = int_to_ptr.hbm [resolvable:$true] %s108
          %s110 = sshll.u32 [#allocation5], 4
          %s111 = int_to_ptr.vmem [resolvable:$true] %s110
          %116 = dma.hbm_to_vmem [thread:$0]  %s109, 512, %s111, [#allocation6], 128, 128, 8
        $region16: #{tpu_custom_call.1} parent=11 // pred_fallthru
          _
      $region12: #{tpu_custom_call.1} parent=5 // pred_fallthru
        _
      %p117 = scmp.lt.s32.totalorder %s15, 2
      // Predicated region
      $region17: #{tpu_custom_call.1} parent=5 // pred_check
        %p118 = pneg %p117
      $region18: #{tpu_custom_call.1} parent=5 // pred_check_branch
        %120 = sbr.rel (%p118) target = $region20
      $region19: #{tpu_custom_call.1} parent=5 // pred_region
        // Predicated region
        $region21: #{tpu_custom_call.1} parent=19 // pred_check
          %p121 = pneg %p35
        $region22: #{tpu_custom_call.1} parent=19 // pred_check_branch
          %123 = sbr.rel (%p121) target = $region24
        $region23: #{tpu_custom_call.1} parent=19 // pred_region
          %s124 = sand.u32 %s25, 1
          %s125 = scalar_lea.sflag [#allocation3], %s124
          %s126 = sand.u32 %s25, 1
          %s127 = smul.addr %s126, 8
          %s128 = scalar_lea.vmem [#allocation2], %s127
          %130 = vsyncadd %s125, 0
          %s131 = smul.addr %s15, 8
          %s132 = scalar_lea.hbm %s0, %s131
          %s134 = sshll.u32 %s132, 4
          %s135 = int_to_ptr.hbm [resolvable:$true] %s134
          %s136 = sshll.u32 %s128, 4
          %s137 = int_to_ptr.vmem [resolvable:$true] %s136
          %139 = dma.hbm_to_vmem [thread:$0]  %s135, 128, %s137, %s125
        $region24: #{tpu_custom_call.1} parent=19 // pred_fallthru
          _
      $region20: #{tpu_custom_call.1} parent=5 // pred_fallthru
        _
      %p140 = scmp.le.s32.totalorder 1, %s15
      %p141 = scmp.lt.s32.totalorder %s15, 3
      %p142 = pnand %p140, %p141
      %p143 = pneg %p142
      // Predicated region
      $region25: #{tpu_custom_call.1} parent=5 // pred_check
        _
      $region26: #{tpu_custom_call.1} parent=5 // pred_check_branch
        %145 = sbr.rel (%p142) target = $region28
      $region27: #{tpu_custom_call.1} parent=5 // pred_region
        %s146 = ssub.s32 %s15, 1
        %s147 = sand.u32 %s28, 1
        %s148 = scalar_lea.sflag [#allocation3], %s147
        %s149 = sand.u32 %s28, 1
        %s150 = smul.addr %s149, 8
        %s151 = scalar_lea.vmem [#allocation2], %s150
        // Predicated region
        $region29: #{tpu_custom_call.1} parent=27 // pred_check
          %p152 = pneg %p41
        $region30: #{tpu_custom_call.1} parent=27 // pred_check_branch
          %154 = sbr.rel (%p152) target = $region32
        $region31: #{tpu_custom_call.1} parent=27 // pred_region
          %156 = dma.done %s148, 128
        $region32: #{tpu_custom_call.1} parent=27 // pred_fallthru
          _
        // Predicated region
        $region33: #{tpu_custom_call.1} parent=27 // pred_check
          %p157 = pneg %p62
        $region34: #{tpu_custom_call.1} parent=27 // pred_check_branch
          %159 = sbr.rel (%p157) target = $region36
        $region35: #{tpu_custom_call.1} parent=27 // pred_region
          %161 = dma.done [#allocation6], 512
        $region36: #{tpu_custom_call.1} parent=27 // pred_fallthru
          _
        %s162 = sand.u32 %s28, 1
        %s163 = scalar_lea.sflag [#allocation3], %s162
        %s164 = sand.u32 %s28, 1
        %s165 = smul.addr %s164, 8
        %s166 = scalar_lea.vmem [#allocation2], %s165
        %p167 = pneg %p41
        %p168 = pneg %p38
        %p169 = pneg %p62
        %p170 = pneg %p59
        %p171 = pneg %p88
        %p172 = pneg %p85
        %s173 = sand.u32 %s75, 1
        %s174 = scalar_lea.sflag [#allocation4], %s173
        %s175 = sand.u32 %s75, 1
        %s176 = smul.addr %s175, 8
        %s177 = scalar_lea.vmem [#allocation7], %s176
        %v178 = vld [vmem:[%s151] sm:$0xff]
        %v179 = vld [vmem:[#allocation5] sm:$0xff]
        %v180 = vld [vmem:[#allocation5 + $0x8] sm:$0xff]
        %v181 = vld [vmem:[#allocation5 + $0x10] sm:$0xff]
        %v182 = vld [vmem:[#allocation5 + $0x18] sm:$0xff]
        %vm183 = vcmask 261120
        %v185 = vsel %vm183, %v178, 0
        %187 = vmatpush.msra.mxu0 0.0
        %188 = vmatpush.msra.mxu0 0.0
        %189 = vmatpush.msra.mxu0 0.0
        %190 = vmatpush.msra.mxu0 0.0
        %191 = vmatpush.msra.mxu0 0.0
        %192 = vmatpush.msra.mxu0 0.0
        %193 = vmatpush.msra.mxu0 0.0
        %194 = vmatpush.msra.mxu0 0.0
        %195 = vmatpush.msra.mxu0 0.0
        %196 = vmatpush.msra.mxu0 0.0
        %197 = vmatpush.msra.mxu0 0.0
        %198 = vmatpush.msra.mxu0 0.0
        %199 = vmatpush.msra.mxu0 %v182
        %200 = vmatpush.msra.mxu0 %v181
        %201 = vmatpush.msra.mxu0 %v180
        %202 = vmatpush.msra.mxu0 %v179
        %203 = vmatmul.f32.gmra.mxu0 %v185
        %v204 = vpop.f32.mrf.mxu0
        %v205 = vadd.f32 0.0, %v204
        %206 = vdwg.mxu0
        %v207 = vmul.f32 %v205, %v205
        %208 = vadd.xlane.f32.xlu0 %v207
        %v209 = vpop.xlane.xlu0 %208
        %v210 = vmax.f32 %v209, 1e-24
        %v211 = vrsqrt.pop %v210
        %v212 = vmul.f32 %v211, %v210
        %v213 = vmul.f32 %v212, %v211
        %v214 = vmul.f32 0.5, %v213
        %v215 = vsub.f32 1.5, %v214
        %v216 = vmul.f32 %v211, %v215
        %vm217 = vweird.f32 %v210
        %vm218 = vweird.f32 %v211
        %vm219 = vmor %vm217, %vm218
        %v220 = vsel %vm219, %v211, %v216
        %v221 = vmul.f32 %v205, %v220
        %222 = vst [vmem:[%s177] sm:$0xff] %v221
        %s223 = sand.u32 %s75, 1
        %s224 = scalar_lea.sflag [#allocation4], %s223
        %s225 = sand.u32 %s75, 1
        %s226 = smul.addr %s225, 8
        %s227 = scalar_lea.vmem [#allocation7], %s226
        // Predicated region
        $region37: #{tpu_custom_call.1} parent=27 // pred_check
          %p228 = pneg %p85
        $region38: #{tpu_custom_call.1} parent=27 // pred_check_branch
          %230 = sbr.rel (%p228) target = $region40
        $region39: #{tpu_custom_call.1} parent=27 // pred_region
          %232 = vsyncadd %s224, 0
          %s233 = smul.addr %s20, 8
          %s234 = scalar_lea.hbm %s2, %s233
          %s236 = sshll.u32 %s227, 4
          %s237 = int_to_ptr.vmem [resolvable:$true] %s236
          %s238 = sshll.u32 %s234, 4
          %s239 = int_to_ptr.hbm [resolvable:$true] %s238
          %241 = dma.vmem_to_hbm [thread:$0]  %s237, 128, %s239, %s224
        $region40: #{tpu_custom_call.1} parent=27 // pred_fallthru
          _
      $region28: #{tpu_custom_call.1} parent=5 // pred_fallthru
        _
      %p242 = scmp.le.s32.totalorder 2, %s15
      // Predicated region
      $region41: #{tpu_custom_call.1} parent=5 // pred_check
        %p243 = pneg %p242
      $region42: #{tpu_custom_call.1} parent=5 // pred_check_branch
        %245 = sbr.rel (%p243) target = $region44
      $region43: #{tpu_custom_call.1} parent=5 // pred_region
        %s246 = ssub.s32 %s15, 2
        // Predicated region
        $region45: #{tpu_custom_call.1} parent=43 // pred_check
          %p247 = pneg %p91
        $region46: #{tpu_custom_call.1} parent=43 // pred_check_branch
          %249 = sbr.rel (%p247) target = $region48
        $region47: #{tpu_custom_call.1} parent=43 // pred_region
          %s250 = sand.u32 %s76, 1
          %s251 = scalar_lea.sflag [#allocation4], %s250
          %s252 = sand.u32 %s76, 1
          %s253 = smul.addr %s252, 8
          %s254 = scalar_lea.vmem [#allocation7], %s253
          %256 = dma.done %s251, 128
        $region48: #{tpu_custom_call.1} parent=43 // pred_fallthru
          _
      $region44: #{tpu_custom_call.1} parent=5 // pred_fallthru
        _
    $region6: #{tpu_custom_call.1} parent=1 // loop_footer
      %s19 = sadd.s32 1, %s15
    $region7: #{tpu_custom_call.1} parent=1 // loop_footer_branch
      %14 = sbr.rel target = $region3
    $region8: #{tpu_custom_call.1} parent=1 // loop_exit
      _
    %257 = vsyncpa [#allocation3], 1
    %s258 = scalar_lea.sflag [#allocation3], 1
    %259 = vsyncpa %s258, 1
    %260 = vsyncpa [#allocation6], 1
    %261 = vsyncpa [#allocation4], 1
    %s262 = scalar_lea.sflag [#allocation4], 1
    %263 = vsyncpa %s262, 1

</llo_original>
